<compile_context>
chip_gen: v7x
topology: tpu7x:2x2x1
jax: 0.10.0
libtpu: 0.0.40
codegen_flags: <defaults>
</compile_context>

<pallas_src>
import jax
import jax.numpy as jnp
from jax.experimental import pallas as pl
from jax.experimental.pallas import tpu as pltpu


def _round_up(x, m):
    return ((x + m - 1) // m) * m


def _sublane_multiple(dtype):
    """Native packed sublane multiple: 8 (f32), 16 (bf16), 32 (int8/fp8)."""
    return max(8, 32 // jnp.dtype(dtype).itemsize)


def _pick_tf(d_ff, cap):
    """Largest hidden-dim tile <= cap that divides d_ff, preferring multiples
    of 256 (v6e/v7x MXU width), then 128 (v5e); falls back to full d_ff."""
    if d_ff <= cap:
        return d_ff
    for step in (256, 128):
        cand = (cap // step) * step
        while cand >= step:
            if d_ff % cand == 0:
                return cand
            cand -= step
    return d_ff


def _tpu_generation():
    """(physical VMEM bytes per TensorCore, TensorCores per device)."""
    vmem = 128 * 1024 * 1024
    try:
        info = pltpu.get_tpu_info()
        cap = int(getattr(info, "vmem_capacity_bytes", 0) or 0)
        if cap > 0:
            vmem = cap
    except Exception:
        pass
    n_tc = 1
    try:
        kind = jax.devices()[0].device_kind.lower()
        if any(tag in kind for tag in ("v4", "v5p", "v7")):
            n_tc = 2
    except Exception:
        pass
    return vmem, n_tc


# --------------------------- kernel bodies ---------------------------------
# All take (x, w1, b1, w2, b2, o) tiles; the last variant adds an f32 scratch.
# TODO(synk): training-mode dropout (pltpu.prng_random_bits mask + 1/(1-p));
#             eval-mode dropout is the identity, matching module.eval().

def _ffn_kernel_single(x_ref, w1_ref, b1_ref, w2_ref, b2_ref, o_ref):
    # Full d_ff resident: one pass, no accumulator.
    h = jnp.dot(x_ref[...], w1_ref[...], preferred_element_type=jnp.float32)
    h = jnp.maximum(h + b1_ref[...].astype(jnp.float32), 0.0)
    y = jnp.dot(h.astype(w2_ref.dtype), w2_ref[...],
                preferred_element_type=jnp.float32)
    o_ref[...] = (y + b2_ref[...].astype(jnp.float32)).astype(o_ref.dtype)


def _ffn_kernel_tiled_f32out(x_ref, w1_ref, b1_ref, w2_ref, b2_ref, o_ref):
    # d_ff-tiled, f32 output: accumulate directly into the VMEM-resident o_ref
    # (its block index is constant across k), seeded with b2 at k == 0.
    k = pl.program_id(1)

    @pl.when(k == 0)
    def _():
        o_ref[...] = jnp.broadcast_to(b2_ref[...], o_ref.shape).astype(o_ref.dtype)

    h = jnp.dot(x_ref[...], w1_ref[...], preferred_element_type=jnp.float32)
    h = jnp.maximum(h + b1_ref[...].astype(jnp.float32), 0.0)
    o_ref[...] += jnp.dot(h.astype(w2_ref.dtype), w2_ref[...],
                          preferred_element_type=jnp.float32)


def _ffn_kernel_tiled_acc(x_ref, w1_ref, b1_ref, w2_ref, b2_ref, o_ref, acc_ref):
    # d_ff-tiled, non-f32 output: f32 VMEM accumulator, seeded with b2.
    k = pl.program_id(1)

    @pl.when(k == 0)
    def _():
        acc_ref[...] = jnp.broadcast_to(b2_ref[...], acc_ref.shape).astype(jnp.float32)

    h = jnp.dot(x_ref[...], w1_ref[...], preferred_element_type=jnp.float32)
    h = jnp.maximum(h + b1_ref[...].astype(jnp.float32), 0.0)
    acc_ref[...] += jnp.dot(h.astype(w2_ref.dtype), w2_ref[...],
                            preferred_element_type=jnp.float32)

    @pl.when(k == pl.num_programs(1) - 1)
    def _():
        o_ref[...] = acc_ref[...].astype(o_ref.dtype)


# ------------------------------ wrapper -------------------------------------

def positionwise_ffn(x, w1, b1, w2, b2, *, tm=None, tf=None):
    """x: (batch, seq, d_model). w1: (d_model, d_ff), w2: (d_ff, d_model)
    (i.e. torch weights transposed), b1: (d_ff,), b2: (d_model,).
    tm=None / tf=None -> auto-pick (full d_ff weight residency when it fits)."""
    batch, seq, d_model = x.shape
    d_ff = w1.shape[1]
    n = batch * seq

    x2 = x.reshape(n, d_model)
    b1_2 = b1.reshape(1, d_ff)
    b2_2 = b2.reshape(1, d_model)

    xsz = x.dtype.itemsize
    wsz = w1.dtype.itemsize
    out_is_f32 = jnp.dtype(x.dtype) == jnp.dtype(jnp.float32)
    sublane = _sublane_multiple(x.dtype)

    phys_vmem, n_tc = _tpu_generation()
    budget = max(32 * 1024 * 1024, int(phys_vmem * 0.8))

    def footprint(tm_, tf_):
        kt_ = pl.cdiv(d_ff, tf_)
        acc_bytes = tm_ * d_model * 4 if (kt_ > 1 and not out_is_f32) else 0
        return (2 * tm_ * d_model * xsz      # x blocks (double-buffered)
                + 2 * d_model * tf_ * wsz    # w1 slice
                + 2 * tf_ * wsz              # b1 slice
                + 2 * tf_ * d_model * wsz    # w2 slice
                + 2 * d_model * wsz          # b2
                + 2 * tm_ * d_model * xsz    # out blocks
                + acc_bytes                  # f32 accumulator scratch
                + tm_ * tf_ * 4)             # live f32 hidden chunk

    # --- Row tile (tm). ---
    auto_tm = tm is None
    tm = 512 if auto_tm else _round_up(int(tm), sublane)
    tm = max(sublane, min(tm, _round_up(n, sublane)))
    # Multi-TensorCore chips: give the "parallel" row axis >= 2 steps.
    if auto_tm and n_tc >= 2 and n > sublane and pl.cdiv(n, tm) < 2:
        half = pl.cdiv(n, 2)
        tm = _round_up(half, 256) if half >= 256 else _round_up(half, sublane)

    # --- Hidden tile (tf): full residency by default, else largest divisor. ---
    tf = d_ff if tf is None else _pick_tf(d_ff, min(int(tf), d_ff))

    # Shrink (tf first, then tm) until the footprint fits the VMEM budget.
    for _ in range(64):
        if footprint(tm, tf) <= budget:
            break
        shrunk = False
        if tf > 256:
            new_tf = _pick_tf(d_ff, max(256, tf // 2))
            if new_tf < tf:
                tf = new_tf
                shrunk = True
        if not shrunk and tm > sublane:
            new_tm = tm // 2
            new_tm = (_round_up(new_tm, 256) if new_tm >= 256
                      else max(sublane, _round_up(new_tm, sublane)))
            if new_tm < tm:
                tm = new_tm
                shrunk = True
        if not shrunk:
            break

    # If weights must stream (tf < d_ff), grow tm toward 1024: arithmetic
    # intensity vs. re-fetched weight bytes scales ~linearly with tm.
    if auto_tm and pl.cdiv(d_ff, tf) > 1:
        while tm < 1024 and 2 * tm <= _round_up(n, sublane):
            new_tm = 2 * tm
            if n_tc >= 2 and pl.cdiv(n, new_tm) < 2:
                break
            if footprint(new_tm, tf) > budget:
                break
            tm = new_tm

    kt = pl.cdiv(d_ff, tf)
    grid = (pl.cdiv(n, tm), kt)

    if kt == 1:
        kernel = _ffn_kernel_single
        scratch = []
    elif out_is_f32:
        kernel = _ffn_kernel_tiled_f32out
        scratch = []
    else:
        kernel = _ffn_kernel_tiled_acc
        scratch = [pltpu.VMEM((tm, d_model), jnp.float32)]

    fp = footprint(tm, tf)
    vmem_limit = int(min(max(2 * fp, 32 * 1024 * 1024), budget))
    vmem_limit = max(vmem_limit, min(fp + (2 << 20), phys_vmem))

    # HBM traffic: weights are re-read once per row tile only when streamed.
    w_reads = grid[0] if kt > 1 else 1
    w_bytes = ((w1.size + b1.size) * wsz
               + (w2.size + b2.size) * w2.dtype.itemsize)
    cost = pl.CostEstimate(
        flops=4 * n * d_model * d_ff,
        transcendentals=0,
        bytes_accessed=int(x2.size * xsz + n * d_model * xsz
                           + w_reads * w_bytes),
    )

    out2 = pl.pallas_call(
        kernel,
        out_shape=jax.ShapeDtypeStruct((n, d_model), x.dtype),
        grid_spec=pltpu.PrefetchScalarGridSpec(
            num_scalar_prefetch=0,
            grid=grid,
            in_specs=[
                pl.BlockSpec((tm, d_model), lambda i, k: (i, 0)),
                pl.BlockSpec((d_model, tf), lambda i, k: (0, k)),
                pl.BlockSpec((1, tf), lambda i, k: (0, k)),
                pl.BlockSpec((tf, d_model), lambda i, k: (k, 0)),
                pl.BlockSpec((1, d_model), lambda i, k: (0, 0)),
            ],
            out_specs=pl.BlockSpec((tm, d_model), lambda i, k: (i, 0)),
            scratch_shapes=scratch,
        ),
        compiler_params=pltpu.CompilerParams(
            dimension_semantics=("parallel", "arbitrary"),
            vmem_limit_bytes=vmem_limit,
        ),
        cost_estimate=cost,
    )(x2, w1, b1_2, w2, b2_2)
    return out2.reshape(batch, seq, d_model)


def _ref_ffn(x, w1, b1, w2, b2):
    # Pure-JAX reference (eval-mode dropout == identity).
    return jnp.maximum(x @ w1 + b1, 0.0) @ w2 + b2


if __name__ == "__main__":
    key = jax.random.PRNGKey(0)

    # --- Small test (full-residency single-pass kernel). ---
    batch, seq, d_model, d_ff = 2, 8, 32, 64
    kx, kw1, kb1, kw2, kb2, key = jax.random.split(key, 6)
    x = jax.random.normal(kx, (batch, seq, d_model), dtype=jnp.float32)
    # Params stored as (in, out) — i.e. torch weight.T.
    w1 = jax.random.normal(kw1, (d_model, d_ff), dtype=jnp.float32) * 0.1
    b1 = jax.random.normal(kb1, (d_ff,), dtype=jnp.float32) * 0.1
    w2 = jax.random.normal(kw2, (d_ff, d_model), dtype=jnp.float32) * 0.1
    b2 = jax.random.normal(kb2, (d_model,), dtype=jnp.float32) * 0.1

    out = jax.block_until_ready(positionwise_ffn(x, w1, b1, w2, b2))
    ref = _ref_ffn(x, w1, b1, w2, b2)
    assert out.shape == (batch, seq, d_model)
    assert jnp.allclose(out, ref, atol=1e-5, rtol=1e-5)

    # --- f32 test exercising both grid axes (d_ff streaming, acc in o_ref). ---
    batch, seq, d_model, d_ff = 2, 128, 128, 512
    kx, kw1, kb1, kw2, kb2, key = jax.random.split(key, 6)
    x = jax.random.normal(kx, (batch, seq, d_model), dtype=jnp.float32)
    w1 = jax.random.normal(kw1, (d_model, d_ff), dtype=jnp.float32) * 0.1
    b1 = jax.random.normal(kb1, (d_ff,), dtype=jnp.float32) * 0.1
    w2 = jax.random.normal(kw2, (d_ff, d_model), dtype=jnp.float32) * 0.1
    b2 = jax.random.normal(kb2, (d_model,), dtype=jnp.float32) * 0.1

    out = jax.block_until_ready(
        positionwise_ffn(x, w1, b1, w2, b2, tm=128, tf=256))
    ref = _ref_ffn(x, w1, b1, w2, b2)
    assert out.shape == (batch, seq, d_model)
    assert jnp.allclose(out, ref, atol=5e-2, rtol=5e-2)

    # --- bf16 test exercising the f32-scratch accumulator path. ---
    xb, w1b, b1b, w2b, b2b = (a.astype(jnp.bfloat16) for a in (x, w1, b1, w2, b2))
    out = jax.block_until_ready(
        positionwise_ffn(xb, w1b, b1b, w2b, b2b, tm=128, tf=128))
    ref = _ref_ffn(xb.astype(jnp.float32), w1b.astype(jnp.float32),
                   b1b.astype(jnp.float32), w2b.astype(jnp.float32),
                   b2b.astype(jnp.float32))
    assert out.shape == (batch, seq, d_model)
    assert jnp.allclose(out.astype(jnp.float32), ref, atol=5e-2, rtol=5e-2)

    print("KERNEL_OK")
</pallas_src>

<mosaic_0001>
module attributes {stable_mosaic.version = 11 : i64} {
  func.func @_ffn_kernel_single(%arg0: i32, %arg1: i32, %arg2: memref<16x32xf32, #tpu.memory_space<vmem>>, %arg3: memref<32x64xf32, #tpu.memory_space<vmem>>, %arg4: memref<1x64xf32, #tpu.memory_space<vmem>>, %arg5: memref<64x32xf32, #tpu.memory_space<vmem>>, %arg6: memref<1x32xf32, #tpu.memory_space<vmem>>, %arg7: memref<16x32xf32, #tpu.memory_space<vmem>>) attributes {dimension_semantics = [#tpu.dimension_semantics<parallel>, #tpu.dimension_semantics<arbitrary>], iteration_bounds = array<i64: 1, 1>, scalar_prefetch = 0 : i64, scratch_operands = 0 : i64, tpu.core_type = #tpu.core_type<tc>, window_params = [{transform_indices = @transform_0, window_bounds = array<i64: 16, 32>}, {transform_indices = @transform_1, window_bounds = array<i64: 32, 64>}, {transform_indices = @transform_2, window_bounds = array<i64: 1, 64>}, {transform_indices = @transform_3, window_bounds = array<i64: 64, 32>}, {pipeline_mode = #tpu.pipeline_mode<synchronous>, transform_indices = @transform_4, window_bounds = array<i64: 1, 32>}, {transform_indices = @transform_5, window_bounds = array<i64: 16, 32>}]} {
    %c0 = arith.constant 0 : index
    %c0_0 = arith.constant 0 : index
    %0 = vector.load %arg2[%c0, %c0_0] : memref<16x32xf32, #tpu.memory_space<vmem>>, vector<16x32xf32>
    %c0_1 = arith.constant 0 : index
    %c0_2 = arith.constant 0 : index
    %1 = vector.load %arg3[%c0_1, %c0_2] : memref<32x64xf32, #tpu.memory_space<vmem>>, vector<32x64xf32>
    %cst = arith.constant dense<0.000000e+00> : vector<16x64xf32>
    %2 = tpu.matmul %0, %1, %cst {dimension_numbers = #tpu.dot_dimension_numbers<[1], [0], [0], [1], [0, 0, 1, 1], [], []>} : vector<16x32xf32>, vector<32x64xf32>, vector<16x64xf32> -> vector<16x64xf32>
    %c0_3 = arith.constant 0 : index
    %c0_4 = arith.constant 0 : index
    %3 = vector.load %arg4[%c0_3, %c0_4] : memref<1x64xf32, #tpu.memory_space<vmem>>, vector<1x64xf32>
    %4 = vector.broadcast %3 : vector<1x64xf32> to vector<16x64xf32>
    %5 = arith.addf %2, %4 : vector<16x64xf32>
    %cst_5 = arith.constant 0.000000e+00 : f32
    %6 = vector.broadcast %cst_5 : f32 to vector<16x64xf32>
    %7 = arith.maximumf %5, %6 : vector<16x64xf32>
    %c0_6 = arith.constant 0 : index
    %c0_7 = arith.constant 0 : index
    %8 = vector.load %arg5[%c0_6, %c0_7] : memref<64x32xf32, #tpu.memory_space<vmem>>, vector<64x32xf32>
    %cst_8 = arith.constant dense<0.000000e+00> : vector<16x32xf32>
    %9 = tpu.matmul %7, %8, %cst_8 {dimension_numbers = #tpu.dot_dimension_numbers<[1], [0], [0], [1], [0, 0, 1, 1], [], []>} : vector<16x64xf32>, vector<64x32xf32>, vector<16x32xf32> -> vector<16x32xf32>
    %c0_9 = arith.constant 0 : index
    %c0_10 = arith.constant 0 : index
    %10 = vector.load %arg6[%c0_9, %c0_10] : memref<1x32xf32, #tpu.memory_space<vmem>>, vector<1x32xf32>
    %11 = vector.broadcast %10 : vector<1x32xf32> to vector<16x32xf32>
    %12 = arith.addf %9, %11 : vector<16x32xf32>
    %c0_11 = arith.constant 0 : index
    %c0_12 = arith.constant 0 : index
    %13 = vector.load %arg7[%c0_11, %c0_12] : memref<16x32xf32, #tpu.memory_space<vmem>>, vector<16x32xf32>
    tpu.vector_store %arg7[%c0_11, %c0_12], %12 {strides = array<i32>} : memref<16x32xf32, #tpu.memory_space<vmem>>, vector<16x32xf32>,
    return
  }
  func.func @transform_0(%arg0: i32, %arg1: i32) -> (i32, i32) {
    %c0_i32 = arith.constant 0 : i32
    %c0_i32_0 = arith.constant 0 : i32
    return %arg0, %c0_i32 : i32, i32
  }
  func.func @transform_1(%arg0: i32, %arg1: i32) -> (i32, i32) {
    %c0_i32 = arith.constant 0 : i32
    %c0_i32_0 = arith.constant 0 : i32
    return %c0_i32, %arg1 : i32, i32
  }
  func.func @transform_2(%arg0: i32, %arg1: i32) -> (i32, i32) {
    %c0_i32 = arith.constant 0 : i32
    %c0_i32_0 = arith.constant 0 : i32
    return %c0_i32, %arg1 : i32, i32
  }
  func.func @transform_3(%arg0: i32, %arg1: i32) -> (i32, i32) {
    %c0_i32 = arith.constant 0 : i32
    %c0_i32_0 = arith.constant 0 : i32
    return %arg1, %c0_i32 : i32, i32
  }
  func.func @transform_4(%arg0: i32, %arg1: i32) -> (i32, i32) {
    %c0_i32 = arith.constant 0 : i32
    %c0_i32_0 = arith.constant 0 : i32
    %c0_i32_1 = arith.constant 0 : i32
    return %c0_i32, %c0_i32_0 : i32, i32
  }
  func.func @transform_5(%arg0: i32, %arg1: i32) -> (i32, i32) {
    %c0_i32 = arith.constant 0 : i32
    %c0_i32_0 = arith.constant 0 : i32
    return %arg0, %c0_i32 : i32, i32
  }
}

</mosaic_0001>

<llo_original>
// kernel: tpu_custom_call.1
$region0: #{tpu_custom_call.1}
  #allocation0 [shape = 'u32[]', space=smem, size = 0x4, offset = 0x4, fixed_abs, tag = 'smem constant byte address 0x4 - core index']
  #allocation1 [shape = 'u32[144,128]{1,0:T(1,128)}', space=vmem, size = 0x12000, scoped, tag = 'internal scratch']
  %s0 = inlined_call_operand.vmem [shape: f32[16,32], index: 0, kind: input, shape index: {}]
  %s1 = inlined_call_operand.vmem [shape: f32[32,64], index: 1, kind: input, shape index: {}]
  %s2 = inlined_call_operand.vmem [shape: f32[1,64], index: 2, kind: input, shape index: {}]
  %s3 = inlined_call_operand.vmem [shape: f32[64,32], index: 3, kind: input, shape index: {}]
  %s4 = inlined_call_operand.vmem [shape: f32[1,32], index: 4, kind: input, shape index: {}]
  %s5 = inlined_call_operand.hbm [shape: f32[16,32], index: 5, kind: output, shape index: {}]
  %s6 = sld [smem:[#allocation0]]
  $region30: #{tpu_custom_call.1} parent=0
    _
  %s8 = ssub.s32 1, %s6
  %s9 = scalar_select 0, %s8, %s6
  $region1: #{tpu_custom_call.1} parent=0
    #allocation2 [shape = 'u8[8192]{0}', space=vmem, size = 0x2000, scoped, tag = 'output window, operand 0, single buffered']
    #allocation3 [shape = 's32[1]{0}', space=sflag, size = 0x4, scoped, tag = 'scoped memory for tpu_custom_call.1']
    %10 = vsyncpa [#allocation3], 0
    // Predicated region
    $region2: #{tpu_custom_call.1} parent=1 // pred_check
      _
    $region3: #{tpu_custom_call.1} parent=1 // pred_check_branch
      %12 = sbr.rel (0) target = $region5
    $region4: #{tpu_custom_call.1} parent=1 // pred_region
      _
    $region5: #{tpu_custom_call.1} parent=1 // pred_fallthru
      _
    // Predicated region
    $region6: #{tpu_custom_call.1} parent=1 // pred_check
      _
    $region7: #{tpu_custom_call.1} parent=1 // pred_check_branch
      %14 = sbr.rel (0) target = $region9
    $region8: #{tpu_custom_call.1} parent=1 // pred_region
      _
    $region9: #{tpu_custom_call.1} parent=1 // pred_fallthru
      _
    // Predicated region
    $region10: #{tpu_custom_call.1} parent=1 // pred_check
      _
    $region11: #{tpu_custom_call.1} parent=1 // pred_check_branch
      %16 = sbr.rel (0) target = $region13
    $region12: #{tpu_custom_call.1} parent=1 // pred_region
      _
    $region13: #{tpu_custom_call.1} parent=1 // pred_fallthru
      _
    // Predicated region
    $region14: #{tpu_custom_call.1} parent=1 // pred_check
      _
    $region15: #{tpu_custom_call.1} parent=1 // pred_check_branch
      %18 = sbr.rel (0) target = $region17
    $region16: #{tpu_custom_call.1} parent=1 // pred_region
      _
    $region17: #{tpu_custom_call.1} parent=1 // pred_fallthru
      _
    // Predicated region
    $region18: #{tpu_custom_call.1} parent=1 // pred_check
      _
    $region19: #{tpu_custom_call.1} parent=1 // pred_check_branch
      %20 = sbr.rel (0) target = $region21
    $region20: #{tpu_custom_call.1} parent=1 // pred_region
      _
    $region21: #{tpu_custom_call.1} parent=1 // pred_fallthru
      _
    %v21 = vld [vmem:[%s0] sm:$0xff]
    %v22 = vld [vmem:[%s0 + $0x8] sm:$0xff]
    %v23 = vld [vmem:[%s1] sm:$0xff]
    %v24 = vld [vmem:[%s1 + $0x8] sm:$0xff]
    %v25 = vld [vmem:[%s1 + $0x10] sm:$0xff]
    %v26 = vld [vmem:[%s1 + $0x18] sm:$0xff]
    %v27 = vld [vmem:[%s2] sm:$0x1]
    %v29 = vlaneseq
    %v30 = vshrl.u32 %v29, 7
    %v31 = vsub.s32 0, %v30
    %v32 = vrot.slane %v27, %v31
    %vm34 = vcmask 261120
    %v36 = vsel %vm34, %v21, 0
    %v39 = vsel %vm34, %v22, 0
    %41 = vmatprep.subr.mxu0 0.0
    %42 = vmatpush1.msra.mxu0 %v23
    %43 = vmatprep.subr.mxu0 0.0
    %44 = vmatpush1.msra.mxu0 %v24
    %45 = vmatprep.subr.mxu0 0.0
    %46 = vmatpush1.msra.mxu0 %v25
    %47 = vmatprep.subr.mxu0 0.0
    %48 = vmatpush1.msra.mxu0 %v26
    %49 = vmatprep.subr.mxu0 0.0
    %50 = vmatpush1.msra.mxu0 0.0
    %51 = vmatprep.subr.mxu0 0.0
    %52 = vmatpush1.msra.mxu0 0.0
    %53 = vmatprep.subr.mxu0 0.0
    %54 = vmatpush1.msra.mxu0 0.0
    %55 = vmatprep.subr.mxu0 0.0
    %56 = vmatpush1.msra.mxu0 0.0
    %57 = vmatprep.subr.mxu0 0.0
    %58 = vmatpush1.msra.mxu0 0.0
    %59 = vmatprep.subr.mxu0 0.0
    %60 = vmatpush1.msra.mxu0 0.0
    %61 = vmatprep.subr.mxu0 0.0
    %62 = vmatpush1.msra.mxu0 0.0
    %63 = vmatprep.subr.mxu0 0.0
    %64 = vmatpush1.msra.mxu0 0.0
    %65 = vmatprep.subr.mxu0 0.0
    %66 = vmatpush1.msra.mxu0 0.0
    %67 = vmatprep.subr.mxu0 0.0
    %68 = vmatpush1.msra.mxu0 0.0
    %69 = vmatprep.subr.mxu0 0.0
    %70 = vmatpush1.msra.mxu0 0.0
    %71 = vmatprep.subr.mxu0 0.0
    %72 = vmatpush1.msra.mxu0 0.0
    %73 = vmatprep.subr.mxu0 0.0
    %74 = vmatpush1.msra.mxu0 0.0
    %75 = vmatprep.subr.mxu0 0.0
    %76 = vmatpush1.msra.mxu0 0.0
    %77 = vmatprep.subr.mxu0 0.0
    %78 = vmatpush1.msra.mxu0 0.0
    %79 = vmatprep.subr.mxu0 0.0
    %80 = vmatpush1.msra.mxu0 0.0
    %81 = vmatprep.subr.mxu0 0.0
    %82 = vmatpush1.msra.mxu0 0.0
    %83 = vmatprep.subr.mxu0 0.0
    %84 = vmatpush1.msra.mxu0 0.0
    %85 = vmatprep.subr.mxu0 0.0
    %86 = vmatpush1.msra.mxu0 0.0
    %87 = vmatprep.subr.mxu0 0.0
    %88 = vmatpush1.msra.mxu0 0.0
    %89 = vmatprep.subr.mxu0 0.0
    %90 = vmatpush1.msra.mxu0 0.0
    %91 = vmatprep.subr.mxu0 0.0
    %92 = vmatpush1.msra.mxu0 0.0
    %93 = vmatprep.subr.mxu0 0.0
    %94 = vmatpush1.msra.mxu0 0.0
    %95 = vmatprep.subr.mxu0 0.0
    %96 = vmatpush1.msra.mxu0 0.0
    %97 = vmatprep.subr.mxu0 0.0
    %98 = vmatpush1.msra.mxu0 0.0
    %99 = vmatprep.subr.mxu0 0.0
    %100 = vmatpush1.msra.mxu0 0.0
    %101 = vmatprep.subr.mxu0 0.0
    %102 = vmatpush1.msra.mxu0 0.0
    %103 = vmatprep.subr.mxu0 0.0
    %104 = vmatpush1.msra.mxu0 0.0
    %105 = vmatprep.mubr.f32.mxu0 0.0
    %106 = vmatmul.mubr.f32.gmra.mrb[0].mxu0 %v36
    %v107 = vpop.f32.mrb[0].mxu0
    %v108 = vadd.f32 %v32, %v107
    %v109 = vpop.f32.mrb[0].mxu0
    %110 = vmatprep.mubr.f32.mxu0 0.0
    %111 = vmatmul.mubr.f32.gmra.mrb[0].mxu0 %v39
    %v112 = vpop.f32.mrb[0].mxu0
    %v113 = vadd.f32 %v32, %v112
    %v114 = vpop.f32.mrb[0].mxu0
    %115 = vdwg.mxu0
    %v116 = vmax.f32 %v108, 0.0
    %v117 = vmax.f32 %v113, 0.0
    %v118 = vld [vmem:[%s3] sm:$0xff]
    %v119 = vld [vmem:[%s3 + $0x8] sm:$0xff]
    %v120 = vld [vmem:[%s3 + $0x10] sm:$0xff]
    %v121 = vld [vmem:[%s3 + $0x18] sm:$0xff]
    %v122 = vld [vmem:[%s3 + $0x20] sm:$0xff]
    %v123 = vld [vmem:[%s3 + $0x28] sm:$0xff]
    %v124 = vld [vmem:[%s3 + $0x30] sm:$0xff]
    %v125 = vld [vmem:[%s3 + $0x38] sm:$0xff]
    %v126 = vld [vmem:[%s4] sm:$0x1]
    %v128 = vlaneseq
    %v129 = vshrl.u32 %v128, 7
    %v130 = vsub.s32 0, %v129
    %v131 = vrot.slane %v126, %v130
    %vm133 = vcmask 523264
    %v135 = vsel %vm133, %v116, 0
    %v138 = vsel %vm133, %v117, 0
    %140 = vmatprep.subr.mxu0 0.0
    %141 = vmatpush1.msra.mxu0 %v118
    %142 = vmatprep.subr.mxu0 0.0
    %143 = vmatpush1.msra.mxu0 %v119
    %144 = vmatprep.subr.mxu0 0.0
    %145 = vmatpush1.msra.mxu0 %v120
    %146 = vmatprep.subr.mxu0 0.0
    %147 = vmatpush1.msra.mxu0 %v121
    %148 = vmatprep.subr.mxu0 0.0
    %149 = vmatpush1.msra.mxu0 %v122
    %150 = vmatprep.subr.mxu0 0.0
    %151 = vmatpush1.msra.mxu0 %v123
    %152 = vmatprep.subr.mxu0 0.0
    %153 = vmatpush1.msra.mxu0 %v124
    %154 = vmatprep.subr.mxu0 0.0
    %155 = vmatpush1.msra.mxu0 %v125
    %156 = vmatprep.subr.mxu0 0.0
    %157 = vmatpush1.msra.mxu0 0.0
    %158 = vmatprep.subr.mxu0 0.0
    %159 = vmatpush1.msra.mxu0 0.0
    %160 = vmatprep.subr.mxu0 0.0
    %161 = vmatpush1.msra.mxu0 0.0
    %162 = vmatprep.subr.mxu0 0.0
    %163 = vmatpush1.msra.mxu0 0.0
    %164 = vmatprep.subr.mxu0 0.0
    %165 = vmatpush1.msra.mxu0 0.0
    %166 = vmatprep.subr.mxu0 0.0
    %167 = vmatpush1.msra.mxu0 0.0
    %168 = vmatprep.subr.mxu0 0.0
    %169 = vmatpush1.msra.mxu0 0.0
    %170 = vmatprep.subr.mxu0 0.0
    %171 = vmatpush1.msra.mxu0 0.0
    %172 = vmatprep.subr.mxu0 0.0
    %173 = vmatpush1.msra.mxu0 0.0
    %174 = vmatprep.subr.mxu0 0.0
    %175 = vmatpush1.msra.mxu0 0.0
    %176 = vmatprep.subr.mxu0 0.0
    %177 = vmatpush1.msra.mxu0 0.0
    %178 = vmatprep.subr.mxu0 0.0
    %179 = vmatpush1.msra.mxu0 0.0
    %180 = vmatprep.subr.mxu0 0.0
    %181 = vmatpush1.msra.mxu0 0.0
    %182 = vmatprep.subr.mxu0 0.0
    %183 = vmatpush1.msra.mxu0 0.0
    %184 = vmatprep.subr.mxu0 0.0
    %185 = vmatpush1.msra.mxu0 0.0
    %186 = vmatprep.subr.mxu0 0.0
    %187 = vmatpush1.msra.mxu0 0.0
    %188 = vmatprep.subr.mxu0 0.0
    %189 = vmatpush1.msra.mxu0 0.0
    %190 = vmatprep.subr.mxu0 0.0
    %191 = vmatpush1.msra.mxu0 0.0
    %192 = vmatprep.subr.mxu0 0.0
    %193 = vmatpush1.msra.mxu0 0.0
    %194 = vmatprep.subr.mxu0 0.0
    %195 = vmatpush1.msra.mxu0 0.0
    %196 = vmatprep.subr.mxu0 0.0
    %197 = vmatpush1.msra.mxu0 0.0
    %198 = vmatprep.subr.mxu0 0.0
    %199 = vmatpush1.msra.mxu0 0.0
    %200 = vmatprep.subr.mxu0 0.0
    %201 = vmatpush1.msra.mxu0 0.0
    %202 = vmatprep.subr.mxu0 0.0
    %203 = vmatpush1.msra.mxu0 0.0
    %204 = vmatprep.mubr.f32.mxu0 0.0
    %205 = vmatmul.mubr.f32.gmra.mrb[0].mxu0 %v135
    %v206 = vpop.f32.mrb[0].mxu0
    %v207 = vadd.f32 %v131, %v206
    %v208 = vpop.f32.mrb[0].mxu0
    %209 = vmatprep.mubr.f32.mxu0 0.0
    %210 = vmatmul.mubr.f32.gmra.mrb[0].mxu0 %v138
    %v211 = vpop.f32.mrb[0].mxu0
    %v212 = vadd.f32 %v131, %v211
    %v213 = vpop.f32.mrb[0].mxu0
    %214 = vdwg.mxu0
    %215 = vst.msk [vmem:[#allocation2] sm:$0xff] %vm34, %v207
    %216 = vst.msk [vmem:[#allocation2 + $0x8] sm:$0xff] %vm34, %v212
    // Predicated region
    $region22: #{tpu_custom_call.1} parent=1 // pred_check
      _
    $region23: #{tpu_custom_call.1} parent=1 // pred_check_branch
      %218 = sbr.rel (0) target = $region25
    $region24: #{tpu_custom_call.1} parent=1 // pred_region
      %s220 = ssub.s32 256, 256
      %221 = vsyncadd [#allocation3], %s220
      %s222 = sshll.u32 [#allocation2], 4
      %s223 = int_to_ptr.vmem [resolvable:$true] %s222
      %228 = dma.vmem_to_hbm [thread:$0]  %s223, 256, %s5, [#allocation3], 128, 128, 8
    $region25: #{tpu_custom_call.1} parent=1 // pred_fallthru
      _
    // Predicated region
    $region26: #{tpu_custom_call.1} parent=1 // pred_check
      _
    $region27: #{tpu_custom_call.1} parent=1 // pred_check_branch
      %230 = sbr.rel (0) target = $region29
    $region28: #{tpu_custom_call.1} parent=1 // pred_region
      %231 = dma.done [#allocation3], 256
    $region29: #{tpu_custom_call.1} parent=1 // pred_fallthru
      _
    %232 = vsyncpa [#allocation3], 1

</llo_original>
